<compile_context>
chip_gen: v7x
topology: tpu7x:2x2x1
jax: 0.10.0
libtpu: 0.0.40
codegen_flags: <defaults>
</compile_context>

<pallas_src>
import jax
import jax.numpy as jnp
from jax.experimental import pallas as pl
from jax.experimental.pallas import tpu as pltpu


def _mlp_kernel(x_ref, w1_ref, b1_ref, w2_ref, b2_ref, o_ref):
    """Lane-major MLP tile: x [in, TB] -> o [out, TB].  VPU only, no MXU."""
    x = x_ref[...]            # (in, TB)   batch on lanes
    w1 = w1_ref[...]          # (H, in)
    b1 = b1_ref[...]          # (H, 1)
    w2 = w2_ref[...]          # (out, H)
    b2 = b2_ref[...]          # (out, 1)

    in_size = x.shape[0]
    hidden = w1.shape[0]
    out_size = o_ref.shape[0]
    tb = x.shape[1]

    # fc1 + ReLU: h[j, :] = relu(sum_i w1[j, i] * x[i, :] + b1[j])
    # Static (tiny) Python loop over in_features -> pure VPU broadcast math.
    h = jnp.broadcast_to(b1, (hidden, tb))
    for i in range(in_size):
        h = h + w1[:, i:i + 1] * x[i:i + 1, :]
    h = jnp.maximum(h, 0.0)

    # fc2: y[o, :] = sum_j w2[o, j] * h[j, :] + b2[o]
    y = jnp.broadcast_to(b2, (out_size, tb))
    for j in range(hidden):
        y = y + w2[:, j:j + 1] * h[j:j + 1, :]

    o_ref[...] = y.astype(o_ref.dtype)


def sales_estimator_forward(x, w1, b1, w2, b2, *, max_tile_b=2048):
    """Forward pass of SalesEstimator.

    x : [B, input_size]
    w1: [hidden, input_size], b1: [hidden]         (PyTorch nn.Linear layout)
    w2: [output, hidden],     b2: [output]
    returns [B, output]
    """
    B, in_size = x.shape
    hidden = w1.shape[0]
    out_size = w2.shape[0]

    # Batch goes on the lane (last, 128-wide) axis: pad B up to a multiple of
    # the lane-aligned tile, transpose to [in, Bp].
    lane = 128
    tile_b = min(max_tile_b, pl.cdiv(B, lane) * lane)   # multiple of 128
    b_pad = pl.cdiv(B, tile_b) * tile_b
    grid_b = b_pad // tile_b

    x_t = jnp.zeros((in_size, b_pad), x.dtype).at[:, :B].set(x.T)
    b1_col = b1.reshape(hidden, 1)
    b2_col = b2.reshape(out_size, 1)

    out_t = pl.pallas_call(
        _mlp_kernel,
        out_shape=jax.ShapeDtypeStruct((out_size, b_pad), jnp.float32),
        grid=(grid_b,),
        in_specs=[
            # activations: tiled along batch (lanes)
            pl.BlockSpec((in_size, tile_b), lambda i: (0, i)),
            # weights / biases: tiny, whole-array resident every step
            pl.BlockSpec((hidden, in_size), lambda i: (0, 0)),
            pl.BlockSpec((hidden, 1), lambda i: (0, 0)),
            pl.BlockSpec((out_size, hidden), lambda i: (0, 0)),
            pl.BlockSpec((out_size, 1), lambda i: (0, 0)),
        ],
        out_specs=pl.BlockSpec((out_size, tile_b), lambda i: (0, i)),
        # Batch tiles are independent; only matters once grid_b >= 2 (no cost
        # for the single-tile toy case).
        compiler_params=pltpu.CompilerParams(
            dimension_semantics=("parallel",)),
    )(x_t, w1, b1_col, w2, b2_col)

    # Layout plumbing back to the PyTorch-facing [B, output] shape.
    return out_t[:, :B].T


def init_params(key, input_size, num_hidden_neurons, output_size):
    """Deterministic init mimicking nn.Linear's U(-1/sqrt(fan_in), 1/sqrt(fan_in))."""
    k1, k2, k3, k4 = jax.random.split(key, 4)
    bound1 = 1.0 / jnp.sqrt(jnp.float32(input_size))
    bound2 = 1.0 / jnp.sqrt(jnp.float32(num_hidden_neurons))
    # PyTorch layout: W is [out_features, in_features], b is [out_features].
    w1 = jax.random.uniform(k1, (num_hidden_neurons, input_size),
                            jnp.float32, -bound1, bound1)
    b1 = jax.random.uniform(k2, (num_hidden_neurons,),
                            jnp.float32, -bound1, bound1)
    w2 = jax.random.uniform(k3, (output_size, num_hidden_neurons),
                            jnp.float32, -bound2, bound2)
    b2 = jax.random.uniform(k4, (output_size,),
                            jnp.float32, -bound2, bound2)
    return w1, b1, w2, b2


if __name__ == "__main__":
    # Hyperparams implied by the script: 1 input feature, 5 hidden neurons,
    # 1 output (sales).  Small batch of 8 samples.
    input_size, num_hidden_neurons, output_size = 1, 5, 1
    batch = 8

    key = jax.random.PRNGKey(0)
    kx, kp = jax.random.split(key)
    x = jax.random.normal(kx, (batch, input_size), dtype=jnp.float32)
    w1, b1, w2, b2 = init_params(kp, input_size, num_hidden_neurons, output_size)

    out = sales_estimator_forward(x, w1, b1, w2, b2)
    out = jax.block_until_ready(out)

    # Pure-JAX reference of the same forward pass (PyTorch layout: y = x@W.T+b).
    ref = jnp.maximum(x @ w1.T + b1, 0.0) @ w2.T + b2
    assert out.shape == (batch, output_size)
    assert jnp.allclose(out, ref, atol=1e-5, rtol=1e-5)

    print("KERNEL_OK")
</pallas_src>

<mosaic_0001>
module attributes {stable_mosaic.version = 11 : i64} {
  func.func @_mlp_kernel(%arg0: i32, %arg1: memref<1x128xf32, #tpu.memory_space<vmem>>, %arg2: memref<5x1xf32, #tpu.memory_space<vmem>>, %arg3: memref<5x1xf32, #tpu.memory_space<vmem>>, %arg4: memref<1x5xf32, #tpu.memory_space<vmem>>, %arg5: memref<1x1xf32, #tpu.memory_space<vmem>>, %arg6: memref<1x128xf32, #tpu.memory_space<vmem>>) attributes {dimension_semantics = [#tpu.dimension_semantics<parallel>], iteration_bounds = array<i64: 1>, scalar_prefetch = 0 : i64, scratch_operands = 0 : i64, tpu.core_type = #tpu.core_type<tc>, window_params = [{transform_indices = @transform_0, window_bounds = array<i64: 1, 128>}, {pipeline_mode = #tpu.pipeline_mode<synchronous>, transform_indices = @transform_1, window_bounds = array<i64: 5, 1>}, {pipeline_mode = #tpu.pipeline_mode<synchronous>, transform_indices = @transform_2, window_bounds = array<i64: 5, 1>}, {pipeline_mode = #tpu.pipeline_mode<synchronous>, transform_indices = @transform_3, window_bounds = array<i64: 1, 5>}, {pipeline_mode = #tpu.pipeline_mode<synchronous>, transform_indices = @transform_4, window_bounds = array<i64: 1, 1>}, {transform_indices = @transform_5, window_bounds = array<i64: 1, 128>}]} {
    %c0 = arith.constant 0 : index
    %c0_0 = arith.constant 0 : index
    %0 = vector.load %arg1[%c0, %c0_0] : memref<1x128xf32, #tpu.memory_space<vmem>>, vector<1x128xf32>
    %c0_1 = arith.constant 0 : index
    %c0_2 = arith.constant 0 : index
    %1 = vector.load %arg2[%c0_1, %c0_2] : memref<5x1xf32, #tpu.memory_space<vmem>>, vector<5x1xf32>
    %c0_3 = arith.constant 0 : index
    %c0_4 = arith.constant 0 : index
    %2 = vector.load %arg3[%c0_3, %c0_4] : memref<5x1xf32, #tpu.memory_space<vmem>>, vector<5x1xf32>
    %c0_5 = arith.constant 0 : index
    %c0_6 = arith.constant 0 : index
    %3 = vector.load %arg4[%c0_5, %c0_6] : memref<1x5xf32, #tpu.memory_space<vmem>>, vector<1x5xf32>
    %c0_7 = arith.constant 0 : index
    %c0_8 = arith.constant 0 : index
    %4 = vector.load %arg5[%c0_7, %c0_8] : memref<1x1xf32, #tpu.memory_space<vmem>>, vector<1x1xf32>
    %5 = vector.shape_cast %2 : vector<5x1xf32> to vector<5x1xf32>
    %6 = vector.broadcast %5 : vector<5x1xf32> to vector<5x128xf32>
    %7 = vector.broadcast %1 : vector<5x1xf32> to vector<5x128xf32>
    %8 = vector.broadcast %0 : vector<1x128xf32> to vector<5x128xf32>
    %9 = arith.mulf %7, %8 : vector<5x128xf32>
    %10 = arith.addf %6, %9 : vector<5x128xf32>
    %cst = arith.constant 0.000000e+00 : f32
    %11 = vector.broadcast %cst : f32 to vector<5x128xf32>
    %12 = arith.maximumf %10, %11 : vector<5x128xf32>
    %13 = vector.shape_cast %4 : vector<1x1xf32> to vector<1x1xf32>
    %14 = vector.broadcast %13 : vector<1x1xf32> to vector<1x128xf32>
    %15 = vector.extract_strided_slice %3 {offsets = [0, 0], sizes = [1, 1], strides = [1, 1]} : vector<1x5xf32> to vector<1x1xf32>
    %16 = vector.extract_strided_slice %12 {offsets = [0, 0], sizes = [1, 128], strides = [1, 1]} : vector<5x128xf32> to vector<1x128xf32>
    %17 = vector.broadcast %15 : vector<1x1xf32> to vector<1x128xf32>
    %18 = arith.mulf %17, %16 : vector<1x128xf32>
    %19 = arith.addf %14, %18 : vector<1x128xf32>
    %20 = vector.extract_strided_slice %3 {offsets = [0, 1], sizes = [1, 1], strides = [1, 1]} : vector<1x5xf32> to vector<1x1xf32>
    %21 = vector.extract_strided_slice %12 {offsets = [1, 0], sizes = [1, 128], strides = [1, 1]} : vector<5x128xf32> to vector<1x128xf32>
    %22 = vector.broadcast %20 : vector<1x1xf32> to vector<1x128xf32>
    %23 = arith.mulf %22, %21 : vector<1x128xf32>
    %24 = arith.addf %19, %23 : vector<1x128xf32>
    %25 = vector.extract_strided_slice %3 {offsets = [0, 2], sizes = [1, 1], strides = [1, 1]} : vector<1x5xf32> to vector<1x1xf32>
    %26 = vector.extract_strided_slice %12 {offsets = [2, 0], sizes = [1, 128], strides = [1, 1]} : vector<5x128xf32> to vector<1x128xf32>
    %27 = vector.broadcast %25 : vector<1x1xf32> to vector<1x128xf32>
    %28 = arith.mulf %27, %26 : vector<1x128xf32>
    %29 = arith.addf %24, %28 : vector<1x128xf32>
    %30 = vector.extract_strided_slice %3 {offsets = [0, 3], sizes = [1, 1], strides = [1, 1]} : vector<1x5xf32> to vector<1x1xf32>
    %31 = vector.extract_strided_slice %12 {offsets = [3, 0], sizes = [1, 128], strides = [1, 1]} : vector<5x128xf32> to vector<1x128xf32>
    %32 = vector.broadcast %30 : vector<1x1xf32> to vector<1x128xf32>
    %33 = arith.mulf %32, %31 : vector<1x128xf32>
    %34 = arith.addf %29, %33 : vector<1x128xf32>
    %35 = vector.extract_strided_slice %3 {offsets = [0, 4], sizes = [1, 1], strides = [1, 1]} : vector<1x5xf32> to vector<1x1xf32>
    %36 = vector.extract_strided_slice %12 {offsets = [4, 0], sizes = [1, 128], strides = [1, 1]} : vector<5x128xf32> to vector<1x128xf32>
    %37 = vector.broadcast %35 : vector<1x1xf32> to vector<1x128xf32>
    %38 = arith.mulf %37, %36 : vector<1x128xf32>
    %39 = arith.addf %34, %38 : vector<1x128xf32>
    %c0_9 = arith.constant 0 : index
    %c0_10 = arith.constant 0 : index
    %40 = vector.load %arg6[%c0_9, %c0_10] : memref<1x128xf32, #tpu.memory_space<vmem>>, vector<1x128xf32>
    tpu.vector_store %arg6[%c0_9, %c0_10], %39 {strides = array<i32>} : memref<1x128xf32, #tpu.memory_space<vmem>>, vector<1x128xf32>,
    return
  }
  func.func @transform_0(%arg0: i32) -> (i32, i32) {
    %c0_i32 = arith.constant 0 : i32
    %c0_i32_0 = arith.constant 0 : i32
    return %c0_i32, %arg0 : i32, i32
  }
  func.func @transform_1(%arg0: i32) -> (i32, i32) {
    %c0_i32 = arith.constant 0 : i32
    %c0_i32_0 = arith.constant 0 : i32
    %c0_i32_1 = arith.constant 0 : i32
    return %c0_i32, %c0_i32_0 : i32, i32
  }
  func.func @transform_2(%arg0: i32) -> (i32, i32) {
    %c0_i32 = arith.constant 0 : i32
    %c0_i32_0 = arith.constant 0 : i32
    %c0_i32_1 = arith.constant 0 : i32
    return %c0_i32, %c0_i32_0 : i32, i32
  }
  func.func @transform_3(%arg0: i32) -> (i32, i32) {
    %c0_i32 = arith.constant 0 : i32
    %c0_i32_0 = arith.constant 0 : i32
    %c0_i32_1 = arith.constant 0 : i32
    return %c0_i32, %c0_i32_0 : i32, i32
  }
  func.func @transform_4(%arg0: i32) -> (i32, i32) {
    %c0_i32 = arith.constant 0 : i32
    %c0_i32_0 = arith.constant 0 : i32
    %c0_i32_1 = arith.constant 0 : i32
    return %c0_i32, %c0_i32_0 : i32, i32
  }
  func.func @transform_5(%arg0: i32) -> (i32, i32) {
    %c0_i32 = arith.constant 0 : i32
    %c0_i32_0 = arith.constant 0 : i32
    return %c0_i32, %arg0 : i32, i32
  }
}

</mosaic_0001>

<llo_original>
// kernel: tpu_custom_call.1
$region0: #{tpu_custom_call.1}
  #allocation0 [shape = 'u32[]', space=smem, size = 0x4, offset = 0x4, fixed_abs, tag = 'smem constant byte address 0x4 - core index']
  #allocation1 [shape = 'u32[144,128]{1,0:T(1,128)}', space=vmem, size = 0x12000, scoped, tag = 'internal scratch']
  #allocation2 [shape = 'f32[1,1]{1,0:T(1,128)S(1)}', space=vmem, size = 0x200, scoped, tag = 'scoped memory for tpu_custom_call.1']
  %s0 = inlined_call_operand.vmem [shape: f32[1,128], index: 0, kind: input, shape index: {}]
  %s1 = inlined_call_operand.vmem [shape: f32[5,1], index: 1, kind: input, shape index: {}]
  %s2 = inlined_call_operand.vmem [shape: f32[5,1], index: 2, kind: input, shape index: {}]
  %s3 = inlined_call_operand.vmem [shape: f32[1,5], index: 3, kind: input, shape index: {}]
  %s4 = inlined_call_operand.<no memory space> [shape: f32[1,1], index: 4, kind: input, shape index: {}]
  %s5 = inlined_call_operand.hbm [shape: f32[1,128], index: 5, kind: output, shape index: {}]
  %s6 = sld [smem:[#allocation0]]
  $region30: #{tpu_custom_call.1} parent=0
    _
  %s8 = ssub.s32 1, %s6
  %s9 = scalar_select 0, %s8, %s6
  %v10 = vstv %s4
  %11 = vst [vmem:[#allocation2] sm:$0x1] %v10
  $region1: #{tpu_custom_call.1} parent=0
    #allocation3 [shape = 'u8[512]{0}', space=vmem, size = 0x400, scoped, tag = 'output window, operand 0, single buffered']
    #allocation4 [shape = 's32[1]{0}', space=sflag, size = 0x4, scoped, tag = 'scoped memory for tpu_custom_call.1']
    %12 = vsyncpa [#allocation4], 0
    // Predicated region
    $region2: #{tpu_custom_call.1} parent=1 // pred_check
      _
    $region3: #{tpu_custom_call.1} parent=1 // pred_check_branch
      %14 = sbr.rel (0) target = $region5
    $region4: #{tpu_custom_call.1} parent=1 // pred_region
      _
    $region5: #{tpu_custom_call.1} parent=1 // pred_fallthru
      _
    // Predicated region
    $region6: #{tpu_custom_call.1} parent=1 // pred_check
      _
    $region7: #{tpu_custom_call.1} parent=1 // pred_check_branch
      %16 = sbr.rel (0) target = $region9
    $region8: #{tpu_custom_call.1} parent=1 // pred_region
      _
    $region9: #{tpu_custom_call.1} parent=1 // pred_fallthru
      _
    // Predicated region
    $region10: #{tpu_custom_call.1} parent=1 // pred_check
      _
    $region11: #{tpu_custom_call.1} parent=1 // pred_check_branch
      %18 = sbr.rel (0) target = $region13
    $region12: #{tpu_custom_call.1} parent=1 // pred_region
      _
    $region13: #{tpu_custom_call.1} parent=1 // pred_fallthru
      _
    // Predicated region
    $region14: #{tpu_custom_call.1} parent=1 // pred_check
      _
    $region15: #{tpu_custom_call.1} parent=1 // pred_check_branch
      %20 = sbr.rel (0) target = $region17
    $region16: #{tpu_custom_call.1} parent=1 // pred_region
      _
    $region17: #{tpu_custom_call.1} parent=1 // pred_fallthru
      _
    // Predicated region
    $region18: #{tpu_custom_call.1} parent=1 // pred_check
      _
    $region19: #{tpu_custom_call.1} parent=1 // pred_check_branch
      %22 = sbr.rel (0) target = $region21
    $region20: #{tpu_custom_call.1} parent=1 // pred_region
      _
    $region21: #{tpu_custom_call.1} parent=1 // pred_fallthru
      _
    %v23 = vld [vmem:[%s0] sm:$0x1]
    %v24 = vld [vmem:[%s1] sm:$0x1f]
    %v25 = vld [vmem:[%s2] sm:$0x1f]
    %v26 = vld [vmem:[%s3] sm:$0x1]
    %v27 = vld [vmem:[#allocation2] sm:$0x1]
    %29 = vset.pattern.permute.xlu0 0
    %30 = vperm.xlu0 %29, %v25
    %v31 = vpop.permute.xlu0 %30
    %34 = vset.pattern.permute.xlu0 0
    %35 = vperm.xlu0 %34, %v24
    %v36 = vpop.permute.xlu0 %35
    %v39 = vlaneseq
    %v40 = vshrl.u32 %v39, 7
    %v41 = vsub.s32 0, %v40
    %v42 = vrot.slane %v23, %v41
    %v44 = vmul.f32 %v36, %v42
    %v45 = vadd.f32 %v31, %v44
    %v46 = vmax.f32 %v45, 0.0
    %48 = vset.pattern.permute.xlu0 0
    %49 = vperm.xlu0 %48, %v27
    %v50 = vpop.permute.xlu0 %49
    %v52 = vlaneseq
    %v53 = vshrl.u32 %v52, 7
    %v54 = vsub.s32 0, %v53
    %v55 = vrot.slane %v50, %v54
    %57 = vset.pattern.permute.xlu0 0
    %58 = vperm.xlu0 %57, %v26
    %v59 = vpop.permute.xlu0 %58
    %v61 = vlaneseq
    %v62 = vshrl.u32 %v61, 7
    %v63 = vsub.s32 0, %v62
    %v64 = vrot.slane %v59, %v63
    %v65 = vmul.f32 %v64, %v46
    %v66 = vadd.f32 %v55, %v65
    %67 = vset.pattern.permute.xlu0 1
    %68 = vperm.xlu0 %67, %v26
    %v69 = vpop.permute.xlu0 %68
    %v71 = vlaneseq
    %v72 = vshrl.u32 %v71, 7
    %v73 = vsub.s32 0, %v72
    %v74 = vrot.slane %v69, %v73
    %v75 = vmul.f32 %v74, %v46
    %v77 = vrot.slane %v75, 1
    %v79 = vadd.f32 %v66, %v77
    %80 = vset.pattern.permute.xlu0 2
    %81 = vperm.xlu0 %80, %v26
    %v82 = vpop.permute.xlu0 %81
    %v84 = vlaneseq
    %v85 = vshrl.u32 %v84, 7
    %v86 = vsub.s32 0, %v85
    %v87 = vrot.slane %v82, %v86
    %v88 = vmul.f32 %v87, %v46
    %v90 = vrot.slane %v88, 2
    %v92 = vadd.f32 %v79, %v90
    %93 = vset.pattern.permute.xlu0 3
    %94 = vperm.xlu0 %93, %v26
    %v95 = vpop.permute.xlu0 %94
    %v97 = vlaneseq
    %v98 = vshrl.u32 %v97, 7
    %v99 = vsub.s32 0, %v98
    %v100 = vrot.slane %v95, %v99
    %v101 = vmul.f32 %v100, %v46
    %v103 = vrot.slane %v101, 3
    %v105 = vadd.f32 %v92, %v103
    %106 = vset.pattern.permute.xlu0 4
    %107 = vperm.xlu0 %106, %v26
    %v108 = vpop.permute.xlu0 %107
    %v110 = vlaneseq
    %v111 = vshrl.u32 %v110, 7
    %v112 = vsub.s32 0, %v111
    %v113 = vrot.slane %v108, %v112
    %v114 = vmul.f32 %v113, %v46
    %v116 = vrot.slane %v114, 4
    %v118 = vadd.f32 %v105, %v116
    %119 = vst [vmem:[#allocation3] sm:$0x1] %v118
    // Predicated region
    $region22: #{tpu_custom_call.1} parent=1 // pred_check
      _
    $region23: #{tpu_custom_call.1} parent=1 // pred_check_branch
      %121 = sbr.rel (0) target = $region25
    $region24: #{tpu_custom_call.1} parent=1 // pred_region
      %s123 = ssub.s32 16, 16
      %124 = vsyncadd [#allocation4], %s123
      %s126 = sshll.u32 [#allocation3], 4
      %s127 = int_to_ptr.vmem [resolvable:$true] %s126
      %129 = dma.vmem_to_hbm [thread:$0]  %s127, 16, %s5, [#allocation4]
    $region25: #{tpu_custom_call.1} parent=1 // pred_fallthru
      _
    // Predicated region
    $region26: #{tpu_custom_call.1} parent=1 // pred_check
      _
    $region27: #{tpu_custom_call.1} parent=1 // pred_check_branch
      %131 = sbr.rel (0) target = $region29
    $region28: #{tpu_custom_call.1} parent=1 // pred_region
      %132 = dma.done [#allocation4], 16
    $region29: #{tpu_custom_call.1} parent=1 // pred_fallthru
      _
    %133 = vsyncpa [#allocation4], 1

</llo_original>
